<compile_context>
chip_gen: v7x
topology: tpu7x:2x2x1
jax: 0.10.0
libtpu: 0.0.40
codegen_flags: <defaults>
</compile_context>

<pallas_src>
import jax
import jax.numpy as jnp
from jax.experimental import pallas as pl
from jax.experimental.pallas import tpu as pltpu

BN_EPS = 1e-5
_MAX_LANE_TILE = 32768


def _round_up(a, b):
    return (a + b - 1) // b * b


def _vmem_capacity_bytes():
    try:
        cap = int(pltpu.get_tpu_info().vmem_capacity_bytes)
        if cap > 0:
            return cap
    except Exception:
        pass
    return 64 * 1024 * 1024          # conservative default (v7x per-core VMEM)


def _choose_tile(mp, lane_cap):
    """Return (tm, mp_pad): tm is a multiple of 128 that divides mp_pad >= mp."""
    lane_cap = max(128, lane_cap - lane_cap % 128)
    mp128 = _round_up(mp, 128)
    if mp128 <= lane_cap:
        return mp128, mp128
    best = 128
    for cand in range(lane_cap, 0, -128):
        if mp128 % cand == 0:
            best = cand
            break
    if best < lane_cap // 2:
        # All divisors of mp128 are small: take a full-size tile and pad the
        # tail, as long as the extra zero traffic stays under ~12.5%.
        mp_pad = _round_up(mp, lane_cap)
        if (mp_pad - mp128) * 8 <= mp128:
            return lane_cap, mp_pad
    return best, mp128


def _stats_kernel(x_ref, w_ref, sum_ref, ssq_ref):
    # x_ref: (K, tm)  w_ref: (Cout, K)  sum_ref/ssq_ref: (Cout, 1) accumulators.
    @pl.when(pl.program_id(2) == 0)
    def _():
        sum_ref[...] = jnp.zeros_like(sum_ref)
        ssq_ref[...] = jnp.zeros_like(ssq_ref)

    y = jnp.dot(w_ref[...].astype(jnp.float32), x_ref[...].astype(jnp.float32),
                preferred_element_type=jnp.float32)            # (Cout, tm)
    sum_ref[...] += jnp.sum(y, axis=1, keepdims=True)
    ssq_ref[...] += jnp.sum(y * y, axis=1, keepdims=True)


def _apply_kernel(x_ref, w_ref, scale_ref, bias_ref, o_ref):
    # x_ref: (K, tm)  w_ref: (Cout, K)  scale/bias: (Cout, 1)  o_ref: (Cout, tm).
    y = jnp.dot(w_ref[...].astype(jnp.float32), x_ref[...].astype(jnp.float32),
                preferred_element_type=jnp.float32)            # (Cout, tm)
    z = y * scale_ref[...] + bias_ref[...]                     # folded BN
    o_ref[...] = (z * jax.nn.sigmoid(z)).astype(o_ref.dtype)   # SiLU


def focus_forward(x, conv_weight, bn_gamma, bn_beta, *, stream_dtype=None):
    """Focus forward. x: (N, C, H, W) NCHW; conv_weight: (Cout, 4*C, 1, 1)."""
    N, C, H, W = x.shape
    assert H % 2 == 0 and W % 2 == 0, "Focus needs even H and W"
    H2, W2 = H // 2, W // 2
    K = 4 * C
    Cout = conv_weight.shape[0]
    Mp = H2 * W2                     # pixels per image after space-to-depth
    M = N * Mp                       # BN population size

    stream_dtype = jnp.dtype(stream_dtype or x.dtype)
    out_dtype = stream_dtype

    # ---- space-to-depth as one fused reshape+transpose (channels-first). ----
    # torch cat order (tl, bl, tr, br) == channel index w_off*2C + h_off*C + c.
    xs = x.astype(stream_dtype).reshape(N, C, H2, 2, W2, 2)
    xc = xs.transpose(0, 5, 3, 1, 2, 4).reshape(N, K, Mp)
    # TODO(synk): fold this gather into the kernels (pl.ANY + strided DMA).

    wm = conv_weight.reshape(Cout, K).astype(jnp.float32)
    in_bytes = stream_dtype.itemsize
    out_bytes = jnp.dtype(out_dtype).itemsize

    # ---- generation-aware VMEM budget and lane-tile size. -------------------
    vmem_cap = _vmem_capacity_bytes()
    vmem_limit = int(vmem_cap * 3 // 4)          # ~96 MiB v5e/v6e, ~48 MiB v7x
    per_lane = 2 * K * in_bytes + 2 * Cout * max(out_bytes, 4)  # dbl-buffered
    lane_cap = min(max(128, (vmem_limit // 2) // per_lane), _MAX_LANE_TILE)
    tm, Mp_pad = _choose_tile(Mp, lane_cap)
    n_tiles = Mp_pad // tm

    if Mp_pad != Mp:
        xc = jnp.pad(xc, ((0, 0), (0, 0), (0, Mp_pad - Mp)))

    # ---------------- pass 1: per-(image, split) partial BN stats ------------
    # Extra "parallel" split axis keeps both v7x TensorCores busy at N == 1.
    S = 2 if n_tiles % 2 == 0 else 1
    Jt = n_tiles // S

    sum_y, ssq_y = pl.pallas_call(
        _stats_kernel,
        out_shape=(jax.ShapeDtypeStruct((N, S, Cout, 1), jnp.float32),
                   jax.ShapeDtypeStruct((N, S, Cout, 1), jnp.float32)),
        grid_spec=pltpu.PrefetchScalarGridSpec(
            num_scalar_prefetch=0,
            grid=(N, S, Jt),
            in_specs=[
                pl.BlockSpec((None, K, tm), lambda n, s, j: (n, 0, s * Jt + j)),
                pl.BlockSpec((Cout, K), lambda n, s, j: (0, 0)),
            ],
            out_specs=(
                pl.BlockSpec((None, None, Cout, 1), lambda n, s, j: (n, s, 0, 0)),
                pl.BlockSpec((None, None, Cout, 1), lambda n, s, j: (n, s, 0, 0)),
            ),
        ),
        compiler_params=pltpu.CompilerParams(
            dimension_semantics=("parallel", "parallel", "arbitrary"),
            vmem_limit_bytes=vmem_limit),
        cost_estimate=pl.CostEstimate(
            flops=2 * N * Mp_pad * K * Cout + 3 * N * Mp_pad * Cout,
            transcendentals=0,
            bytes_accessed=(N * Mp_pad * K * in_bytes + N * S * Cout * 8
                            + Cout * K * 4)),
    )(xc, wm)

    # ---- tiny Chan-style merge of partial (count, sum, M2) -> folded BN -----
    per_split = Jt * tm
    counts = [max(0, min(Mp, (s + 1) * per_split) - s * per_split)
              for s in range(S)]
    cnt = jnp.asarray(counts, dtype=jnp.float32).reshape(1, S, 1, 1)
    safe_cnt = jnp.maximum(cnt, 1.0)
    mean_p = sum_y / safe_cnt                                    # (N,S,Cout,1)
    m2_p = jnp.maximum(ssq_y - sum_y * mean_p, 0.0)
    mean = jnp.sum(sum_y, axis=(0, 1)) / M                       # (Cout, 1)
    m2 = (jnp.sum(m2_p, axis=(0, 1))
          + jnp.sum(cnt * (mean_p - mean.reshape(1, 1, Cout, 1)) ** 2,
                    axis=(0, 1)))
    var = jnp.maximum(m2 / M, 0.0)                 # biased (training-mode) var
    inv = jax.lax.rsqrt(var + BN_EPS)
    scale = bn_gamma.astype(jnp.float32).reshape(Cout, 1) * inv
    bias = bn_beta.astype(jnp.float32).reshape(Cout, 1) - scale * mean

    # ---------------- pass 2: 1x1 conv + folded BN + SiLU --------------------
    out = pl.pallas_call(
        _apply_kernel,
        out_shape=jax.ShapeDtypeStruct((N, Cout, Mp_pad), out_dtype),
        grid_spec=pltpu.PrefetchScalarGridSpec(
            num_scalar_prefetch=0,
            grid=(N, n_tiles),
            in_specs=[
                pl.BlockSpec((None, K, tm), lambda n, j: (n, 0, j)),
                pl.BlockSpec((Cout, K), lambda n, j: (0, 0)),
                pl.BlockSpec((Cout, 1), lambda n, j: (0, 0)),
                pl.BlockSpec((Cout, 1), lambda n, j: (0, 0)),
            ],
            out_specs=pl.BlockSpec((None, Cout, tm), lambda n, j: (n, 0, j)),
        ),
        compiler_params=pltpu.CompilerParams(
            dimension_semantics=("parallel", "parallel"),
            vmem_limit_bytes=vmem_limit),
        cost_estimate=pl.CostEstimate(
            flops=2 * N * Mp_pad * K * Cout + 4 * N * Mp_pad * Cout,
            transcendentals=N * Mp_pad * Cout,
            bytes_accessed=(N * Mp_pad * K * in_bytes
                            + N * Mp_pad * Cout * out_bytes
                            + (Cout * K + 2 * Cout) * 4)),
    )(xc, wm, scale, bias)

    # (N, Cout, Mp_pad) -> drop padded pixels -> NCHW (pure reshape, no transpose).
    return out[:, :, :Mp].reshape(N, Cout, H2, W2)


def reference_forward(x, conv_weight, bn_gamma, bn_beta):
    """Pure-JAX reference for correctness check."""
    tl = x[:, :, ::2, ::2]
    tr = x[:, :, ::2, 1::2]
    bl = x[:, :, 1::2, ::2]
    br = x[:, :, 1::2, 1::2]
    xc = jnp.concatenate([tl, bl, tr, br], axis=1)
    N, K, H2, W2 = xc.shape
    Cout = conv_weight.shape[0]
    y = jnp.einsum('nkhw,ok->nohw', xc, conv_weight.reshape(Cout, K))
    mean = jnp.mean(y, axis=(0, 2, 3), keepdims=True)
    var = jnp.mean((y - mean) ** 2, axis=(0, 2, 3), keepdims=True)
    yh = (y - mean) * jax.lax.rsqrt(var + BN_EPS)
    z = bn_gamma.reshape(1, Cout, 1, 1) * yh + bn_beta.reshape(1, Cout, 1, 1)
    return z * jax.nn.sigmoid(z)


if __name__ == "__main__":
    key = jax.random.PRNGKey(0)
    k_x, k_w = jax.random.split(key)

    N, C, H, W = 2, 4, 16, 16
    Cout = 8

    x = jax.random.normal(k_x, (N, C, H, W), dtype=jnp.float32)
    # Conv2d(4*C, Cout, 1, 1, bias=False) weight: (Cout, 4*C, 1, 1)
    conv_weight = 0.1 * jax.random.normal(k_w, (Cout, 4 * C, 1, 1),
                                          dtype=jnp.float32)
    # BatchNorm2d(Cout) default init: gamma=1, beta=0.
    bn_gamma = jnp.ones((Cout,), dtype=jnp.float32)
    bn_beta = jnp.zeros((Cout,), dtype=jnp.float32)

    ref = reference_forward(x, conv_weight, bn_gamma, bn_beta)

    # f32 streaming path (tight check).
    out = jax.block_until_ready(focus_forward(x, conv_weight, bn_gamma, bn_beta))
    assert out.shape == (N, Cout, H // 2, W // 2), out.shape
    assert jnp.allclose(out, ref, atol=1e-4, rtol=1e-4), \
        float(jnp.max(jnp.abs(out - ref)))

    # bf16 activation-streaming path (stats/matmul stay f32; looser check).
    out_bf16 = jax.block_until_ready(
        focus_forward(x, conv_weight, bn_gamma, bn_beta,
                      stream_dtype=jnp.bfloat16))
    assert out_bf16.shape == (N, Cout, H // 2, W // 2), out_bf16.shape
    assert jnp.allclose(out_bf16.astype(jnp.float32), ref, atol=8e-2, rtol=8e-2), \
        float(jnp.max(jnp.abs(out_bf16.astype(jnp.float32) - ref)))

    print("KERNEL_OK")
</pallas_src>

<mosaic_0001>
module attributes {stable_mosaic.version = 11 : i64} {
  func.func @_stats_kernel(%arg0: i32, %arg1: i32, %arg2: i32, %arg3: memref<1x16x128xf32, #tpu.memory_space<vmem>>, %arg4: memref<8x16xf32, #tpu.memory_space<vmem>>, %arg5: memref<1x1x8x1xf32, #tpu.memory_space<vmem>>, %arg6: memref<1x1x8x1xf32, #tpu.memory_space<vmem>>) attributes {dimension_semantics = [#tpu.dimension_semantics<parallel>, #tpu.dimension_semantics<parallel>, #tpu.dimension_semantics<arbitrary>], iteration_bounds = array<i64: 2, 1, 1>, scalar_prefetch = 0 : i64, scratch_operands = 0 : i64, tpu.core_type = #tpu.core_type<tc>, window_params = [{transform_indices = @transform_0, window_bounds = array<i64: 1, 16, 128>}, {pipeline_mode = #tpu.pipeline_mode<synchronous>, transform_indices = @transform_1, window_bounds = array<i64: 8, 16>}, {transform_indices = @transform_2, window_bounds = array<i64: 1, 1, 8, 1>}, {transform_indices = @transform_3, window_bounds = array<i64: 1, 1, 8, 1>}]} {
    %c0_i32 = arith.constant 0 : i32
    %0 = arith.cmpi eq, %arg2, %c0_i32 : i32
    %1 = arith.extui %0 : i1 to i32
    %c0_i32_0 = arith.constant 0 : i32
    %2 = arith.cmpi ne, %1, %c0_i32_0 : i32
    scf.if %2 {
      %cst_23 = arith.constant 0.000000e+00 : f32
      %24 = vector.broadcast %cst_23 : f32 to vector<8x1xf32>
      %c0_24 = arith.constant 0 : index
      %c0_25 = arith.constant 0 : index
      %c0_26 = arith.constant 0 : index
      %c0_27 = arith.constant 0 : index
      %25 = vector.load %arg5[%c0_24, %c0_25, %c0_26, %c0_27] : memref<1x1x8x1xf32, #tpu.memory_space<vmem>>, vector<1x1x8x1xf32>
      %26 = vector.shape_cast %25 : vector<1x1x8x1xf32> to vector<8x1xf32>
      %27 = vector.shape_cast %24 : vector<8x1xf32> to vector<1x1x8x1xf32>
      tpu.vector_store %arg5[%c0_24, %c0_25, %c0_26, %c0_27], %27 {strides = array<i32>} : memref<1x1x8x1xf32, #tpu.memory_space<vmem>>, vector<1x1x8x1xf32>,
      %cst_28 = arith.constant 0.000000e+00 : f32
      %28 = vector.broadcast %cst_28 : f32 to vector<8x1xf32>
      %c0_29 = arith.constant 0 : index
      %c0_30 = arith.constant 0 : index
      %c0_31 = arith.constant 0 : index
      %c0_32 = arith.constant 0 : index
      %29 = vector.load %arg6[%c0_29, %c0_30, %c0_31, %c0_32] : memref<1x1x8x1xf32, #tpu.memory_space<vmem>>, vector<1x1x8x1xf32>
      %30 = vector.shape_cast %29 : vector<1x1x8x1xf32> to vector<8x1xf32>
      %31 = vector.shape_cast %28 : vector<8x1xf32> to vector<1x1x8x1xf32>
      tpu.vector_store %arg6[%c0_29, %c0_30, %c0_31, %c0_32], %31 {strides = array<i32>} : memref<1x1x8x1xf32, #tpu.memory_space<vmem>>, vector<1x1x8x1xf32>,
    } else {
    }
    %c0 = arith.constant 0 : index
    %c0_1 = arith.constant 0 : index
    %3 = vector.load %arg4[%c0, %c0_1] : memref<8x16xf32, #tpu.memory_space<vmem>>, vector<8x16xf32>
    %c0_2 = arith.constant 0 : index
    %c0_3 = arith.constant 0 : index
    %c0_4 = arith.constant 0 : index
    %4 = vector.load %arg3[%c0_2, %c0_3, %c0_4] : memref<1x16x128xf32, #tpu.memory_space<vmem>>, vector<1x16x128xf32>
    %5 = vector.shape_cast %4 : vector<1x16x128xf32> to vector<16x128xf32>
    %cst = arith.constant dense<0.000000e+00> : vector<8x128xf32>
    %6 = tpu.matmul %3, %5, %cst {dimension_numbers = #tpu.dot_dimension_numbers<[1], [0], [0], [1], [0, 0, 1, 1], [], []>} : vector<8x16xf32>, vector<16x128xf32>, vector<8x128xf32> -> vector<8x128xf32>
    %c0_5 = arith.constant 0 : index
    %c0_6 = arith.constant 0 : index
    %c0_7 = arith.constant 0 : index
    %c0_8 = arith.constant 0 : index
    %7 = vector.load %arg5[%c0_5, %c0_6, %c0_7, %c0_8] : memref<1x1x8x1xf32, #tpu.memory_space<vmem>>, vector<1x1x8x1xf32>
    %8 = vector.shape_cast %7 : vector<1x1x8x1xf32> to vector<8x1xf32>
    %cst_9 = arith.constant dense<0.000000e+00> : vector<8xf32>
    %9 = vector.multi_reduction <add>, %6, %cst_9 [1] : vector<8x128xf32> to vector<8xf32>
    %10 = vector.shape_cast %9 : vector<8xf32> to vector<8x1xf32>
    %11 = arith.addf %8, %10 : vector<8x1xf32>
    %c0_10 = arith.constant 0 : index
    %c0_11 = arith.constant 0 : index
    %c0_12 = arith.constant 0 : index
    %c0_13 = arith.constant 0 : index
    %12 = vector.load %arg5[%c0_10, %c0_11, %c0_12, %c0_13] : memref<1x1x8x1xf32, #tpu.memory_space<vmem>>, vector<1x1x8x1xf32>
    %13 = vector.shape_cast %12 : vector<1x1x8x1xf32> to vector<8x1xf32>
    %14 = vector.shape_cast %11 : vector<8x1xf32> to vector<1x1x8x1xf32>
    tpu.vector_store %arg5[%c0_10, %c0_11, %c0_12, %c0_13], %14 {strides = array<i32>} : memref<1x1x8x1xf32, #tpu.memory_space<vmem>>, vector<1x1x8x1xf32>,
    %c0_14 = arith.constant 0 : index
    %c0_15 = arith.constant 0 : index
    %c0_16 = arith.constant 0 : index
    %c0_17 = arith.constant 0 : index
    %15 = vector.load %arg6[%c0_14, %c0_15, %c0_16, %c0_17] : memref<1x1x8x1xf32, #tpu.memory_space<vmem>>, vector<1x1x8x1xf32>
    %16 = vector.shape_cast %15 : vector<1x1x8x1xf32> to vector<8x1xf32>
    %17 = arith.mulf %6, %6 : vector<8x128xf32>
    %cst_18 = arith.constant dense<0.000000e+00> : vector<8xf32>
    %18 = vector.multi_reduction <add>, %17, %cst_18 [1] : vector<8x128xf32> to vector<8xf32>
    %19 = vector.shape_cast %18 : vector<8xf32> to vector<8x1xf32>
    %20 = arith.addf %16, %19 : vector<8x1xf32>
    %c0_19 = arith.constant 0 : index
    %c0_20 = arith.constant 0 : index
    %c0_21 = arith.constant 0 : index
    %c0_22 = arith.constant 0 : index
    %21 = vector.load %arg6[%c0_19, %c0_20, %c0_21, %c0_22] : memref<1x1x8x1xf32, #tpu.memory_space<vmem>>, vector<1x1x8x1xf32>
    %22 = vector.shape_cast %21 : vector<1x1x8x1xf32> to vector<8x1xf32>
    %23 = vector.shape_cast %20 : vector<8x1xf32> to vector<1x1x8x1xf32>
    tpu.vector_store %arg6[%c0_19, %c0_20, %c0_21, %c0_22], %23 {strides = array<i32>} : memref<1x1x8x1xf32, #tpu.memory_space<vmem>>, vector<1x1x8x1xf32>,
    return
  }
  func.func @transform_0(%arg0: i32, %arg1: i32, %arg2: i32) -> (i32, i32, i32) {
    %c1_i32 = arith.constant 1 : i32
    %0 = arith.muli %arg1, %c1_i32 : i32
    %1 = arith.addi %0, %arg2 : i32
    %c0_i32 = arith.constant 0 : i32
    %c0_i32_0 = arith.constant 0 : i32
    return %arg0, %c0_i32, %1 : i32, i32, i32
  }
  func.func @transform_1(%arg0: i32, %arg1: i32, %arg2: i32) -> (i32, i32) {
    %c0_i32 = arith.constant 0 : i32
    %c0_i32_0 = arith.constant 0 : i32
    %c0_i32_1 = arith.constant 0 : i32
    return %c0_i32, %c0_i32_0 : i32, i32
  }
  func.func @transform_2(%arg0: i32, %arg1: i32, %arg2: i32) -> (i32, i32, i32, i32) {
    %c0_i32 = arith.constant 0 : i32
    %c0_i32_0 = arith.constant 0 : i32
    %c0_i32_1 = arith.constant 0 : i32
    return %arg0, %arg1, %c0_i32, %c0_i32_0 : i32, i32, i32, i32
  }
  func.func @transform_3(%arg0: i32, %arg1: i32, %arg2: i32) -> (i32, i32, i32, i32) {
    %c0_i32 = arith.constant 0 : i32
    %c0_i32_0 = arith.constant 0 : i32
    %c0_i32_1 = arith.constant 0 : i32
    return %arg0, %arg1, %c0_i32, %c0_i32_0 : i32, i32, i32, i32
  }
}

</mosaic_0001>

<llo_original>
// kernel: tpu_custom_call.1
$region0: #{tpu_custom_call.1}
  #allocation0 [shape = 'u32[]', space=smem, size = 0x4, offset = 0x4, fixed_abs, tag = 'smem constant byte address 0x4 - core index']
  #allocation1 [shape = 'u32[144,128]{1,0:T(1,128)}', space=vmem, size = 0x12000, scoped, tag = 'internal scratch']
  %s0 = inlined_call_operand.hbm [shape: f32[2,16,128], index: 0, kind: input, shape index: {}]
  %s1 = inlined_call_operand.hbm [shape: f32[8,16], index: 1, kind: input, shape index: {}]
  %s2 = inlined_call_operand.vmem [shape: f32[2,1,8,1], index: 2, kind: output, shape index: {0}]
  %s3 = inlined_call_operand.vmem [shape: f32[2,1,8,1], index: 3, kind: output, shape index: {1}]
  %4 = xla_tuple %s2, %s3
  %s5 = sld [smem:[#allocation0]]
  $region61: #{tpu_custom_call.1} parent=0
    _
  %s7 = ssub.s32 1, %s5
  %s8 = scalar_select 0, %s7, %s5
  $region1: #{tpu_custom_call.1} parent=0
    #allocation2 [shape = 'u8[16384]{0}', space=vmem, size = 0x4000, scoped, tag = 'input window, operand 0']
    #allocation3 [shape = 's32[2]{0}', space=sflag, size = 0x8, scoped, tag = 'scoped memory for tpu_custom_call.1']
    #allocation4 [shape = 'u8[4096]{0}', space=vmem, size = 0x1000, scoped, tag = 'input window, operand 1, single buffered']
    #allocation5 [shape = 's32[1]{0}', space=sflag, size = 0x4, scoped, tag = 'scoped memory for tpu_custom_call.1']
    %9 = vsyncpa [#allocation3], 0
    %s10 = scalar_lea.sflag [#allocation3], 1
    %11 = vsyncpa %s10, 0
    %12 = vsyncpa [#allocation5], 0
    loop: start=0, step=1, limit=4
    $region2: #{tpu_custom_call.1} parent=1 // loop_pre_header
      _
    $region3: #{tpu_custom_call.1} parent=1 // loop_header
      %s14 = sphi 0, %s18
      %p15 = scmp.ge.s32.totalorder %s14, 4
      %s21 = sphi 0, %s40
      %s22 = sphi 0, %s36
      %s23 = sphi 0, %s32
      %s24 = sphi 0, %s21
      %s25 = sphi 0, %s22
      %s26 = sphi 0, %s23
      %s27 = sphi 0, %s24
      %s28 = sphi 0, %s25
      %s29 = sphi 0, %s26
      %s47 = sphi 0, %s49
      %s50 = sphi 0, %s47
      %s51 = sphi 0, %s50
      %s67 = sphi 0, %s51
      %s71 = sphi 0, %s71
      %s73 = sphi 0, %s71
      %s74 = sphi 0, %s73
      %s88 = sphi 0, %s74
      %s96 = sphi 0, %s98
      %s99 = sphi 0, %s96
      %s100 = sphi 0, %s99
      %s116 = sphi 0, %s100
      %s124 = sphi 0, %s126
      %s127 = sphi 0, %s124
      %s128 = sphi 0, %s127
      %s144 = sphi 0, %s128
    $region4: #{tpu_custom_call.1} parent=1 // loop_header_branch
      %17 = sbr.rel (%p15) target = $region8
    $region5: #{tpu_custom_call.1} parent=1 // loop_body
      %s19 = ssub.s32 %s14, 1
      %s20 = ssub.s32 %s14, 2
      %s30 = sadd.s32 1, %s23
      %p31 = scmp.ge.s32.totalorder %s30, 1
      %s32 = scalar_select %p31, 0, %s30
      %s33 = sadd.s32 1, %s22
      %s34 = scalar_select %p31, %s33, %s22
      %p35 = scmp.ge.s32.totalorder %s34, 1
      %s36 = scalar_select %p35, 0, %s34
      %s37 = sadd.s32 1, %s21
      %s38 = scalar_select %p35, %s37, %s21
      %p39 = scmp.ge.s32.totalorder %s38, 2
      %s40 = scalar_select %p39, 0, %s38
      %s41 = sadd.s32 %s22, %s23
      %s42 = sadd.s32 %s36, %s32
      %s43 = ssub.s32 %s21, %s40
      %s44 = ssub.s32 %s41, %s42
      %s45 = sor.u32 %s43, %s44
      %p46 = scmp.eq.s32.totalorder %s45, 0
      %s48 = sadd.s32 %s47, 1
      %s49 = scalar_select %p46, %s47, %s48
      %p52 = pneg %p46
      %p53 = scmp.eq.s32.totalorder %s14, 1
      %p54 = por %p52, %p53
      %p55 = scmp.ne.s32.totalorder %s47, %s50
      %p56 = scmp.eq.s32.totalorder %s14, 0
      %p57 = por %p55, %p56
      %p58 = scmp.ne.s32.totalorder %s47, %s50
      %p59 = scmp.eq.s32.totalorder %s19, 1
      %p60 = por %p58, %p59
      %p61 = scmp.ne.s32.totalorder %s50, %s51
      %p62 = scmp.eq.s32.totalorder %s19, 0
      %p63 = por %p61, %p62
      %p64 = scmp.ne.s32.totalorder %s50, %s51
      %p65 = scmp.eq.s32.totalorder %s20, 1
      %p66 = por %p64, %p65
      %p68 = scmp.ne.s32.totalorder %s51, %s67
      %p69 = scmp.eq.s32.totalorder %s20, 0
      %p70 = por %p68, %p69
      %s72 = sadd.s32 %s71, 1
      %p75 = scmp.eq.s32.totalorder %s14, 1
      %p76 = scmp.ne.s32.totalorder %s71, %s73
      %p77 = scmp.eq.s32.totalorder %s14, 0
      %p78 = por %p76, %p77
      %p79 = scmp.ne.s32.totalorder %s71, %s73
      %p80 = scmp.eq.s32.totalorder %s19, 1
      %p81 = por %p79, %p80
      %p82 = scmp.ne.s32.totalorder %s73, %s74
      %p83 = scmp.eq.s32.totalorder %s19, 0
      %p84 = por %p82, %p83
      %p85 = scmp.ne.s32.totalorder %s73, %s74
      %p86 = scmp.eq.s32.totalorder %s20, 1
      %p87 = por %p85, %p86
      %p89 = scmp.ne.s32.totalorder %s74, %s88
      %p90 = scmp.eq.s32.totalorder %s20, 0
      %p91 = por %p89, %p90
      %s92 = ssub.s32 %s21, %s40
      %s93 = ssub.s32 %s22, %s36
      %s94 = sor.u32 %s92, %s93
      %p95 = scmp.eq.s32.totalorder %s94, 0
      %s97 = sadd.s32 %s96, 1
      %s98 = scalar_select %p95, %s96, %s97
      %p101 = pneg %p95
      %p102 = scmp.eq.s32.totalorder %s14, 1
      %p103 = por %p101, %p102
      %p104 = scmp.ne.s32.totalorder %s96, %s99
      %p105 = scmp.eq.s32.totalorder %s14, 0
      %p106 = por %p104, %p105
      %p107 = scmp.ne.s32.totalorder %s96, %s99
      %p108 = scmp.eq.s32.totalorder %s19, 1
      %p109 = por %p107, %p108
      %p110 = scmp.ne.s32.totalorder %s99, %s100
      %p111 = scmp.eq.s32.totalorder %s19, 0
      %p112 = por %p110, %p111
      %p113 = scmp.ne.s32.totalorder %s99, %s100
      %p114 = scmp.eq.s32.totalorder %s20, 1
      %p115 = por %p113, %p114
      %p117 = scmp.ne.s32.totalorder %s100, %s116
      %p118 = scmp.eq.s32.totalorder %s20, 0
      %p119 = por %p117, %p118
      %s120 = ssub.s32 %s21, %s40
      %s121 = ssub.s32 %s22, %s36
      %s122 = sor.u32 %s120, %s121
      %p123 = scmp.eq.s32.totalorder %s122, 0
      %s125 = sadd.s32 %s124, 1
      %s126 = scalar_select %p123, %s124, %s125
      %p129 = pneg %p123
      %p130 = scmp.eq.s32.totalorder %s14, 1
      %p131 = por %p129, %p130
      %p132 = scmp.ne.s32.totalorder %s124, %s127
      %p133 = scmp.eq.s32.totalorder %s14, 0
      %p134 = por %p132, %p133
      %p135 = scmp.ne.s32.totalorder %s124, %s127
      %p136 = scmp.eq.s32.totalorder %s19, 1
      %p137 = por %p135, %p136
      %p138 = scmp.ne.s32.totalorder %s127, %s128
      %p139 = scmp.eq.s32.totalorder %s19, 0
      %p140 = por %p138, %p139
      %p141 = scmp.ne.s32.totalorder %s127, %s128
      %p142 = scmp.eq.s32.totalorder %s20, 1
      %p143 = por %p141, %p142
      %p145 = scmp.ne.s32.totalorder %s128, %s144
      %p146 = scmp.eq.s32.totalorder %s20, 0
      %p147 = por %p145, %p146
      %p148 = scmp.le.s32.totalorder 1, %s14
      %p149 = scmp.lt.s32.totalorder %s14, 3
      %p150 = pnand %p148, %p149
      %p151 = pneg %p150
      // Predicated region
      $region9: #{tpu_custom_call.1} parent=5 // pred_check
        _
      $region10: #{tpu_custom_call.1} parent=5 // pred_check_branch
        %153 = sbr.rel (%p150) target = $region12
      $region11: #{tpu_custom_call.1} parent=5 // pred_region
        %s154 = ssub.s32 %s14, 1
        // Predicated region
        $region13: #{tpu_custom_call.1} parent=11 // pred_check
          %p155 = pneg %p84
        $region14: #{tpu_custom_call.1} parent=11 // pred_check_branch
          %157 = sbr.rel (%p155) target = $region16
        $region15: #{tpu_custom_call.1} parent=11 // pred_region
          %s159 = ssub.s32 128, 128
          %160 = vsyncadd [#allocation5], %s159
          %s162 = sshll.u32 [#allocation4], 4
          %s163 = int_to_ptr.vmem [resolvable:$true] %s162
          %165 = dma.hbm_to_vmem [thread:$0]  %s1, 128, %s163, [#allocation5]
        $region16: #{tpu_custom_call.1} parent=11 // pred_fallthru
          _
      $region12: #{tpu_custom_call.1} parent=5 // pred_fallthru
        _
      %p166 = scmp.lt.s32.totalorder %s14, 2
      // Predicated region
      $region17: #{tpu_custom_call.1} parent=5 // pred_check
        %p167 = pneg %p166
      $region18: #{tpu_custom_call.1} parent=5 // pred_check_branch
        %169 = sbr.rel (%p167) target = $region20
      $region19: #{tpu_custom_call.1} parent=5 // pred_region
        // Predicated region
        $region21: #{tpu_custom_call.1} parent=19 // pred_check
          %p170 = pneg %p57
        $region22: #{tpu_custom_call.1} parent=19 // pred_check_branch
          %172 = sbr.rel (%p170) target = $region24
        $region23: #{tpu_custom_call.1} parent=19 // pred_region
          %s173 = sand.u32 %s47, 1
          %s174 = scalar_lea.sflag [#allocation3], %s173
          %s175 = sand.u32 %s47, 1
          %s176 = smul.addr %s175, 16
          %s177 = scalar_lea.vmem [#allocation2], %s176
          %s178 = sadd.s32 %s22, %s23
          %s180 = ssub.s32 256, 256
          %181 = vsyncadd %s174, %s180
          %s182 = smul.addr %s21, 2
          %s183 = sadd.s32 %s178, %s182
          %s184 = smul.addr %s183, 128
          %s185 = scalar_lea.hbm %s0, %s184
          %s186 = sshll.u32 %s177, 4
          %s187 = int_to_ptr.vmem [resolvable:$true] %s186
          %192 = dma.hbm_to_vmem [thread:$0]  %s185, 256, %s187, %s174, 128, 128, 8
        $region24: #{tpu_custom_call.1} parent=19 // pred_fallthru
          _
      $region20: #{tpu_custom_call.1} parent=5 // pred_fallthru
        _
      %p193 = scmp.le.s32.totalorder 1, %s14
      %p194 = scmp.lt.s32.totalorder %s14, 3
      %p195 = pnand %p193, %p194
      %p196 = pneg %p195
      // Predicated region
      $region25: #{tpu_custom_call.1} parent=5 // pred_check
        _
      $region26: #{tpu_custom_call.1} parent=5 // pred_check_branch
        %198 = sbr.rel (%p195) target = $region28
      $region27: #{tpu_custom_call.1} parent=5 // pred_region
        %s199 = ssub.s32 %s14, 1
        %s200 = sand.u32 %s50, 1
        %s201 = scalar_lea.sflag [#allocation3], %s200
        %s202 = sand.u32 %s50, 1
        %s203 = smul.addr %s202, 16
        %s204 = scalar_lea.vmem [#allocation2], %s203
        // Predicated region
        $region29: #{tpu_custom_call.1} parent=27 // pred_check
          %p205 = pneg %p63
        $region30: #{tpu_custom_call.1} parent=27 // pred_check_branch
          %207 = sbr.rel (%p205) target = $region32
        $region31: #{tpu_custom_call.1} parent=27 // pred_region
          %208 = dma.done %s201, 256
        $region32: #{tpu_custom_call.1} parent=27 // pred_fallthru
          _
        // Predicated region
        $region33: #{tpu_custom_call.1} parent=27 // pred_check
          %p209 = pneg %p84
        $region34: #{tpu_custom_call.1} parent=27 // pred_check_branch
          %211 = sbr.rel (%p209) target = $region36
        $region35: #{tpu_custom_call.1} parent=27 // pred_region
          %212 = dma.done [#allocation5], 128
        $region36: #{tpu_custom_call.1} parent=27 // pred_fallthru
          _
        %s213 = sand.u32 %s50, 1
        %s214 = scalar_lea.sflag [#allocation3], %s213
        %s215 = sand.u32 %s50, 1
        %s216 = smul.addr %s215, 16
        %s217 = scalar_lea.vmem [#allocation2], %s216
        %p218 = pneg %p63
        %p219 = pneg %p60
        %p220 = pneg %p84
        %p221 = pneg %p81
        %p222 = pneg %p112
        %p223 = pneg %p109
        %p224 = scmp.lt.s32.totalorder %s24, 1
        %s225 = scalar_select %p224, %s24, 1
        %p226 = scmp.lt.s32.totalorder %s25, 0
        %s227 = scalar_select %p226, %s25, 0
        %s228 = sadd.s32 %s227, %s225
        %s229 = smul.addr %s228, 8
        %s230 = scalar_lea.vmem %s2, %s229
        %p231 = pneg %p140
        %p232 = pneg %p137
        %p233 = scmp.lt.s32.totalorder %s24, 1
        %s234 = scalar_select %p233, %s24, 1
        %p235 = scmp.lt.s32.totalorder %s25, 0
        %s236 = scalar_select %p235, %s25, 0
        %s237 = sadd.s32 %s236, %s234
        %s238 = smul.addr %s237, 8
        %s239 = scalar_lea.vmem %s3, %s238
        %s240 = sadd.s32 %s25, %s26
        %p241 = scmp.lt.s32.totalorder %s24, 1
        %s242 = scalar_select %p241, %s24, 1
        %p243 = scmp.lt.s32.totalorder %s25, 0
        %s244 = scalar_select %p243, %s25, 0
        %s245 = sadd.s32 %s244, %s242
        %s246 = smul.addr %s245, 8
        %s247 = scalar_lea.vmem %s2, %s246
        %p248 = scmp.lt.s32.totalorder %s24, 1
        %s249 = scalar_select %p248, %s24, 1
        %p250 = scmp.lt.s32.totalorder %s25, 0
        %s251 = scalar_select %p250, %s25, 0
        %s252 = sadd.s32 %s251, %s249
        %s253 = smul.addr %s252, 8
        %s254 = scalar_lea.vmem %s3, %s253
        %p255 = scmp.eq.s32.totalorder %s26, 0
        // Predicated region
        $region37: #{tpu_custom_call.1} parent=27 // pred_check
          %p256 = pneg %p255
        $region38: #{tpu_custom_call.1} parent=27 // pred_check_branch
          %258 = sbr.rel (%p256) target = $region40
        $region39: #{tpu_custom_call.1} parent=27 // pred_region
          %vm259 = vcmask 7168
          %260 = vst.msk [vmem:[%s247] sm:$0xff] %vm259, 0.0
          %261 = vst.msk [vmem:[%s254] sm:$0xff] %vm259, 0.0
        $region40: #{tpu_custom_call.1} parent=27 // pred_fallthru
          _
        %v262 = vld [vmem:[#allocation4] sm:$0xff]
        %v263 = vld [vmem:[%s204] sm:$0xff]
        %v264 = vld [vmem:[%s204 + $0x8] sm:$0xff]
        %vm265 = vcmask 130048
        %v267 = vsel %vm265, %v262, 0
        %269 = vmatprep.subr.mxu0 0.0
        %270 = vmatpush1.msra.mxu0 %v263
        %271 = vmatprep.subr.mxu0 0.0
        %272 = vmatpush1.msra.mxu0 %v264
        %273 = vmatprep.subr.mxu0 0.0
        %274 = vmatpush1.msra.mxu0 0.0
        %275 = vmatprep.subr.mxu0 0.0
        %276 = vmatpush1.msra.mxu0 0.0
        %277 = vmatprep.subr.mxu0 0.0
        %278 = vmatpush1.msra.mxu0 0.0
        %279 = vmatprep.subr.mxu0 0.0
        %280 = vmatpush1.msra.mxu0 0.0
        %281 = vmatprep.subr.mxu0 0.0
        %282 = vmatpush1.msra.mxu0 0.0
        %283 = vmatprep.subr.mxu0 0.0
        %284 = vmatpush1.msra.mxu0 0.0
        %285 = vmatprep.subr.mxu0 0.0
        %286 = vmatpush1.msra.mxu0 0.0
        %287 = vmatprep.subr.mxu0 0.0
        %288 = vmatpush1.msra.mxu0 0.0
        %289 = vmatprep.subr.mxu0 0.0
        %290 = vmatpush1.msra.mxu0 0.0
        %291 = vmatprep.subr.mxu0 0.0
        %292 = vmatpush1.msra.mxu0 0.0
        %293 = vmatprep.subr.mxu0 0.0
        %294 = vmatpush1.msra.mxu0 0.0
        %295 = vmatprep.subr.mxu0 0.0
        %296 = vmatpush1.msra.mxu0 0.0
        %297 = vmatprep.subr.mxu0 0.0
        %298 = vmatpush1.msra.mxu0 0.0
        %299 = vmatprep.subr.mxu0 0.0
        %300 = vmatpush1.msra.mxu0 0.0
        %301 = vmatprep.subr.mxu0 0.0
        %302 = vmatpush1.msra.mxu0 0.0
        %303 = vmatprep.subr.mxu0 0.0
        %304 = vmatpush1.msra.mxu0 0.0
        %305 = vmatprep.subr.mxu0 0.0
        %306 = vmatpush1.msra.mxu0 0.0
        %307 = vmatprep.subr.mxu0 0.0
        %308 = vmatpush1.msra.mxu0 0.0
        %309 = vmatprep.subr.mxu0 0.0
        %310 = vmatpush1.msra.mxu0 0.0
        %311 = vmatprep.subr.mxu0 0.0
        %312 = vmatpush1.msra.mxu0 0.0
        %313 = vmatprep.subr.mxu0 0.0
        %314 = vmatpush1.msra.mxu0 0.0
        %315 = vmatprep.subr.mxu0 0.0
        %316 = vmatpush1.msra.mxu0 0.0
        %317 = vmatprep.subr.mxu0 0.0
        %318 = vmatpush1.msra.mxu0 0.0
        %319 = vmatprep.subr.mxu0 0.0
        %320 = vmatpush1.msra.mxu0 0.0
        %321 = vmatprep.subr.mxu0 0.0
        %322 = vmatpush1.msra.mxu0 0.0
        %323 = vmatprep.subr.mxu0 0.0
        %324 = vmatpush1.msra.mxu0 0.0
        %325 = vmatprep.subr.mxu0 0.0
        %326 = vmatpush1.msra.mxu0 0.0
        %327 = vmatprep.subr.mxu0 0.0
        %328 = vmatpush1.msra.mxu0 0.0
        %329 = vmatprep.subr.mxu0 0.0
        %330 = vmatpush1.msra.mxu0 0.0
        %331 = vmatprep.subr.mxu0 0.0
        %332 = vmatpush1.msra.mxu0 0.0
        %333 = vmatprep.mubr.f32.mxu0 0.0
        %334 = vmatmul.mubr.f32.gmra.mrb[0].mxu0 %v267
        %v335 = vpop.f32.mrb[0].mxu0
        %v336 = vadd.f32 0.0, %v335
        %v337 = vpop.f32.mrb[0].mxu0
        %338 = vdwg.mxu0
        %v339 = vld [vmem:[%s247] sm:$0xff]
        %340 = vadd.xlane.f32.xlu0 %v336
        %v341 = vpop.xlane.xlu0 %340
        %v342 = vadd.f32 %v339, %v341
        %vm343 = vcmask 7168
        %344 = vst.msk [vmem:[%s247] sm:$0xff] %vm343, %v342
        %v345 = vld [vmem:[%s254] sm:$0xff]
        %v346 = vmul.f32 %v336, %v336
        %347 = vadd.xlane.f32.xlu0 %v346
        %v348 = vpop.xlane.xlu0 %347
        %v349 = vadd.f32 %v345, %v348
        %350 = vst.msk [vmem:[%s254] sm:$0xff] %vm343, %v349
        %p351 = scmp.lt.s32.totalorder %s24, 1
        %s352 = scalar_select %p351, %s24, 1
        %p353 = scmp.lt.s32.totalorder %s25, 0
        %s354 = scalar_select %p353, %s25, 0
        %s355 = sadd.s32 %s354, %s352
        %s356 = smul.addr %s355, 8
        %s357 = scalar_lea.vmem %s2, %s356
        %p358 = scmp.lt.s32.totalorder %s24, 1
        %s359 = scalar_select %p358, %s24, 1
        %p360 = scmp.lt.s32.totalorder %s25, 0
        %s361 = scalar_select %p360, %s25, 0
        %s362 = sadd.s32 %s361, %s359
        %s363 = smul.addr %s362, 8
        %s364 = scalar_lea.vmem %s3, %s363
        // Predicated region
        $region41: #{tpu_custom_call.1} parent=27 // pred_check
          %p365 = pneg %p109
        $region42: #{tpu_custom_call.1} parent=27 // pred_check_branch
          %367 = sbr.rel (%p365) target = $region44
        $region43: #{tpu_custom_call.1} parent=27 // pred_region
          _
        $region44: #{tpu_custom_call.1} parent=27 // pred_fallthru
          _
        // Predicated region
        $region45: #{tpu_custom_call.1} parent=27 // pred_check
          %p368 = pneg %p137
        $region46: #{tpu_custom_call.1} parent=27 // pred_check_branch
          %370 = sbr.rel (%p368) target = $region48
        $region47: #{tpu_custom_call.1} parent=27 // pred_region
          _
        $region48: #{tpu_custom_call.1} parent=27 // pred_fallthru
          _
      $region28: #{tpu_custom_call.1} parent=5 // pred_fallthru
        _
      %p371 = scmp.le.s32.totalorder 2, %s14
      // Predicated region
      $region49: #{tpu_custom_call.1} parent=5 // pred_check
        %p372 = pneg %p371
      $region50: #{tpu_custom_call.1} parent=5 // pred_check_branch
        %374 = sbr.rel (%p372) target = $region52
      $region51: #{tpu_custom_call.1} parent=5 // pred_region
        %s375 = ssub.s32 %s14, 2
        // Predicated region
        $region53: #{tpu_custom_call.1} parent=51 // pred_check
          %p376 = pneg %p115
        $region54: #{tpu_custom_call.1} parent=51 // pred_check_branch
          %378 = sbr.rel (%p376) target = $region56
        $region55: #{tpu_custom_call.1} parent=51 // pred_region
          %p379 = scmp.lt.s32.totalorder %s27, 1
          %s380 = scalar_select %p379, %s27, 1
          %p381 = scmp.lt.s32.totalorder %s28, 0
          %s382 = scalar_select %p381, %s28, 0
          %s383 = sadd.s32 %s382, %s380
          %s384 = smul.addr %s383, 8
          %s385 = scalar_lea.vmem %s2, %s384
        $region56: #{tpu_custom_call.1} parent=51 // pred_fallthru
          _
        // Predicated region
        $region57: #{tpu_custom_call.1} parent=51 // pred_check
          %p386 = pneg %p143
        $region58: #{tpu_custom_call.1} parent=51 // pred_check_branch
          %388 = sbr.rel (%p386) target = $region60
        $region59: #{tpu_custom_call.1} parent=51 // pred_region
          %p389 = scmp.lt.s32.totalorder %s27, 1
          %s390 = scalar_select %p389, %s27, 1
          %p391 = scmp.lt.s32.totalorder %s28, 0
          %s392 = scalar_select %p391, %s28, 0
          %s393 = sadd.s32 %s392, %s390
          %s394 = smul.addr %s393, 8
          %s395 = scalar_lea.vmem %s3, %s394
        $region60: #{tpu_custom_call.1} parent=51 // pred_fallthru
          _
      $region52: #{tpu_custom_call.1} parent=5 // pred_fallthru
        _
    $region6: #{tpu_custom_call.1} parent=1 // loop_footer
      %s18 = sadd.s32 1, %s14
    $region7: #{tpu_custom_call.1} parent=1 // loop_footer_branch
      %13 = sbr.rel target = $region3
    $region8: #{tpu_custom_call.1} parent=1 // loop_exit
      _
    %396 = vsyncpa [#allocation3], 1
    %s397 = scalar_lea.sflag [#allocation3], 1
    %398 = vsyncpa %s397, 1
    %399 = vsyncpa [#allocation5], 1

</llo_original>
